<compile_context>
chip_gen: v5e
topology: v5e:2x2
jax: 0.10.0
libtpu: 0.0.40
codegen_flags: <defaults>
</compile_context>

<pallas_src>
import jax
import jax.numpy as jnp
from jax.experimental import pallas as pl
from jax.experimental.pallas import tpu as pltpu

LANE = 128


def actor_mlp_kernel(x_ref, w1_ref, b1_ref, w2_ref, b2_ref, w3_ref, b3_ref, o_ref):
    # Layer 1: Linear + ReLU  (bf16 MXU operands, f32 accumulate)
    x = x_ref[...].astype(jnp.bfloat16)
    h1 = jnp.dot(x, w1_ref[...], preferred_element_type=jnp.float32)
    h1 = jnp.maximum(h1 + b1_ref[...], 0.0)

    # Layer 2: Linear + ReLU
    h2 = jnp.dot(h1.astype(jnp.bfloat16), w2_ref[...],
                 preferred_element_type=jnp.float32)
    h2 = jnp.maximum(h2 + b2_ref[...], 0.0)

    # Layer 3: Linear + Tanh  (output block is lane-dense, padded to 128)
    h3 = jnp.dot(h2.astype(jnp.bfloat16), w3_ref[...],
                 preferred_element_type=jnp.float32)
    o_ref[...] = jnp.tanh(h3 + b3_ref[...]).astype(o_ref.dtype)


def actor_forward(state, params, *, tile_batch=512):
    """state: [B, state_dim] f32. params: dict of (w1,b1,w2,b2,w3,b3) in f32,
    weights stored (in_dim, out_dim)."""
    w1, b1, w2, b2, w3, b3 = (params["w1"], params["b1"], params["w2"],
                              params["b2"], params["w3"], params["b3"])
    B, state_dim = state.shape
    action_dim = w3.shape[1]

    # ---- lane-dense output: pad the last layer to a multiple of 128 lanes.
    n_pad = max(LANE, ((action_dim + LANE - 1) // LANE) * LANE)
    w3p = jnp.pad(w3, ((0, 0), (0, n_pad - action_dim)))
    b3p = jnp.pad(b3, ((0, 0), (0, n_pad - action_dim)))

    # ---- bf16 operands for the MXU (biases stay f32 for the f32 epilogue).
    w1c = w1.astype(jnp.bfloat16)
    w2c = w2.astype(jnp.bfloat16)
    w3c = w3p.astype(jnp.bfloat16)

    # ---- batch tiling: TB rows per grid step, multiple of 8 sublanes.
    b_round8 = max(8, ((B + 7) // 8) * 8)
    TB = min(tile_batch, b_round8)
    B_pad = ((B + TB - 1) // TB) * TB
    if B_pad != B:
        state = jnp.pad(state, ((0, B_pad - B), (0, 0)))

    grid = (B_pad // TB,)

    # Weights / biases: same block for every grid step -> stay VMEM-resident.
    resident = lambda shp: pl.BlockSpec(shp, lambda i: (0, 0))

    out = pl.pallas_call(
        actor_mlp_kernel,
        out_shape=jax.ShapeDtypeStruct((B_pad, n_pad), jnp.float32),
        grid=grid,
        in_specs=[
            pl.BlockSpec((TB, state_dim), lambda i: (i, 0)),   # batch-tiled
            resident(w1c.shape), resident(b1.shape),
            resident(w2c.shape), resident(b2.shape),
            resident(w3c.shape), resident(b3p.shape),
        ],
        out_specs=pl.BlockSpec((TB, n_pad), lambda i: (i, 0)),
        compiler_params=pltpu.CompilerParams(
            dimension_semantics=("parallel",)),
    )(state, w1c, b1, w2c, b2, w3c, b3p)

    # Strip batch padding and the lane padding of the action dimension.
    return out[:B, :action_dim]


def init_params(key, state_dim, hidden_dim, action_dim):
    """Deterministic synthetic init (shapes match nn.Linear, stored transposed)."""
    ks = jax.random.split(key, 6)

    def linear(kw, kb, fan_in, fan_out):
        bound = 1.0 / jnp.sqrt(fan_in)
        # (in, out) layout so the kernel computes x @ W directly.
        w = jax.random.uniform(kw, (fan_in, fan_out), jnp.float32, -bound, bound)
        b = jax.random.uniform(kb, (1, fan_out), jnp.float32, -bound, bound)
        return w, b

    w1, b1 = linear(ks[0], ks[1], state_dim, hidden_dim)
    w2, b2 = linear(ks[2], ks[3], hidden_dim, hidden_dim)
    w3, b3 = linear(ks[4], ks[5], hidden_dim, action_dim)
    return {"w1": w1, "b1": b1, "w2": w2, "b2": b2, "w3": w3, "b3": b3}


def _reference(state, params):
    # Pure-JAX f32 reference (same math as the PyTorch Sequential).
    h1 = jnp.maximum(state @ params["w1"] + params["b1"], 0.0)
    h2 = jnp.maximum(h1 @ params["w2"] + params["b2"], 0.0)
    return jnp.tanh(h2 @ params["w3"] + params["b3"])


if __name__ == "__main__":
    key = jax.random.PRNGKey(0)
    k_state, k_state2, k_params = jax.random.split(key, 3)

    state_dim = 16
    hidden_dim = 32
    action_dim = 4
    params = init_params(k_params, state_dim, hidden_dim, action_dim)

    # Case 1: tiny batch (single grid step).
    batch = 8
    state = jax.random.normal(k_state, (batch, state_dim), dtype=jnp.float32)
    out = jax.block_until_ready(actor_forward(state, params))
    ref = _reference(state, params)
    assert out.shape == (batch, action_dim)
    # bf16 MXU operands -> loosened tolerance vs. the f32 reference.
    assert jnp.allclose(out, ref, atol=5e-2, rtol=5e-2), float(
        jnp.max(jnp.abs(out - ref)))

    # Case 2: larger, non-multiple batch to exercise tiling + padding
    # (grid > 1, batch padded to a multiple of the tile).
    batch2 = 200
    state2 = jax.random.normal(k_state2, (batch2, state_dim), dtype=jnp.float32)
    out2 = jax.block_until_ready(actor_forward(state2, params, tile_batch=64))
    ref2 = _reference(state2, params)
    assert out2.shape == (batch2, action_dim)
    assert jnp.allclose(out2, ref2, atol=5e-2, rtol=5e-2), float(
        jnp.max(jnp.abs(out2 - ref2)))

    print("KERNEL_OK")
</pallas_src>

<mosaic_0001>
module attributes {stable_mosaic.version = 11 : i64} {
  func.func @actor_mlp_kernel(%arg0: i32, %arg1: memref<8x16xf32, #tpu.memory_space<vmem>>, %arg2: memref<16x32xbf16, #tpu.memory_space<vmem>>, %arg3: memref<1x32xf32, #tpu.memory_space<vmem>>, %arg4: memref<32x32xbf16, #tpu.memory_space<vmem>>, %arg5: memref<1x32xf32, #tpu.memory_space<vmem>>, %arg6: memref<32x128xbf16, #tpu.memory_space<vmem>>, %arg7: memref<1x128xf32, #tpu.memory_space<vmem>>, %arg8: memref<8x128xf32, #tpu.memory_space<vmem>>) attributes {dimension_semantics = [#tpu.dimension_semantics<parallel>], iteration_bounds = array<i64: 1>, scalar_prefetch = 0 : i64, scratch_operands = 0 : i64, tpu.core_type = #tpu.core_type<tc>, window_params = [{transform_indices = @transform_0, window_bounds = array<i64: 8, 16>}, {pipeline_mode = #tpu.pipeline_mode<synchronous>, transform_indices = @transform_1, window_bounds = array<i64: 16, 32>}, {pipeline_mode = #tpu.pipeline_mode<synchronous>, transform_indices = @transform_2, window_bounds = array<i64: 1, 32>}, {pipeline_mode = #tpu.pipeline_mode<synchronous>, transform_indices = @transform_3, window_bounds = array<i64: 32, 32>}, {pipeline_mode = #tpu.pipeline_mode<synchronous>, transform_indices = @transform_4, window_bounds = array<i64: 1, 32>}, {pipeline_mode = #tpu.pipeline_mode<synchronous>, transform_indices = @transform_5, window_bounds = array<i64: 32, 128>}, {pipeline_mode = #tpu.pipeline_mode<synchronous>, transform_indices = @transform_6, window_bounds = array<i64: 1, 128>}, {transform_indices = @transform_7, window_bounds = array<i64: 8, 128>}]} {
    %c0 = arith.constant 0 : index
    %c0_0 = arith.constant 0 : index
    %0 = vector.load %arg1[%c0, %c0_0] : memref<8x16xf32, #tpu.memory_space<vmem>>, vector<8x16xf32>
    %1 = arith.truncf %0 : vector<8x16xf32> to vector<8x16xbf16>
    %c0_1 = arith.constant 0 : index
    %c0_2 = arith.constant 0 : index
    %2 = vector.load %arg2[%c0_1, %c0_2] : memref<16x32xbf16, #tpu.memory_space<vmem>>, vector<16x32xbf16>
    %cst = arith.constant dense<0.000000e+00> : vector<8x32xf32>
    %3 = tpu.matmul %1, %2, %cst {dimension_numbers = #tpu.dot_dimension_numbers<[1], [0], [0], [1], [0, 0, 1, 1], [], []>} : vector<8x16xbf16>, vector<16x32xbf16>, vector<8x32xf32> -> vector<8x32xf32>
    %c0_3 = arith.constant 0 : index
    %c0_4 = arith.constant 0 : index
    %4 = vector.load %arg3[%c0_3, %c0_4] : memref<1x32xf32, #tpu.memory_space<vmem>>, vector<1x32xf32>
    %5 = vector.broadcast %4 : vector<1x32xf32> to vector<8x32xf32>
    %6 = arith.addf %3, %5 : vector<8x32xf32>
    %cst_5 = arith.constant 0.000000e+00 : f32
    %7 = vector.broadcast %cst_5 : f32 to vector<8x32xf32>
    %8 = arith.maximumf %6, %7 : vector<8x32xf32>
    %9 = arith.truncf %8 : vector<8x32xf32> to vector<8x32xbf16>
    %c0_6 = arith.constant 0 : index
    %c0_7 = arith.constant 0 : index
    %10 = vector.load %arg4[%c0_6, %c0_7] : memref<32x32xbf16, #tpu.memory_space<vmem>>, vector<32x32xbf16>
    %cst_8 = arith.constant dense<0.000000e+00> : vector<8x32xf32>
    %11 = tpu.matmul %9, %10, %cst_8 {dimension_numbers = #tpu.dot_dimension_numbers<[1], [0], [0], [1], [0, 0, 1, 1], [], []>} : vector<8x32xbf16>, vector<32x32xbf16>, vector<8x32xf32> -> vector<8x32xf32>
    %c0_9 = arith.constant 0 : index
    %c0_10 = arith.constant 0 : index
    %12 = vector.load %arg5[%c0_9, %c0_10] : memref<1x32xf32, #tpu.memory_space<vmem>>, vector<1x32xf32>
    %13 = vector.broadcast %12 : vector<1x32xf32> to vector<8x32xf32>
    %14 = arith.addf %11, %13 : vector<8x32xf32>
    %cst_11 = arith.constant 0.000000e+00 : f32
    %15 = vector.broadcast %cst_11 : f32 to vector<8x32xf32>
    %16 = arith.maximumf %14, %15 : vector<8x32xf32>
    %17 = arith.truncf %16 : vector<8x32xf32> to vector<8x32xbf16>
    %c0_12 = arith.constant 0 : index
    %c0_13 = arith.constant 0 : index
    %18 = vector.load %arg6[%c0_12, %c0_13] : memref<32x128xbf16, #tpu.memory_space<vmem>>, vector<32x128xbf16>
    %cst_14 = arith.constant dense<0.000000e+00> : vector<8x128xf32>
    %19 = tpu.matmul %17, %18, %cst_14 {dimension_numbers = #tpu.dot_dimension_numbers<[1], [0], [0], [1], [0, 0, 1, 1], [], []>} : vector<8x32xbf16>, vector<32x128xbf16>, vector<8x128xf32> -> vector<8x128xf32>
    %c0_15 = arith.constant 0 : index
    %c0_16 = arith.constant 0 : index
    %20 = vector.load %arg7[%c0_15, %c0_16] : memref<1x128xf32, #tpu.memory_space<vmem>>, vector<1x128xf32>
    %21 = vector.broadcast %20 : vector<1x128xf32> to vector<8x128xf32>
    %22 = arith.addf %19, %21 : vector<8x128xf32>
    %23 = math.tanh %22 : vector<8x128xf32>
    %c0_17 = arith.constant 0 : index
    %c0_18 = arith.constant 0 : index
    %24 = vector.load %arg8[%c0_17, %c0_18] : memref<8x128xf32, #tpu.memory_space<vmem>>, vector<8x128xf32>
    tpu.vector_store %arg8[%c0_17, %c0_18], %23 {strides = array<i32>} : memref<8x128xf32, #tpu.memory_space<vmem>>, vector<8x128xf32>,
    return
  }
  func.func @transform_0(%arg0: i32) -> (i32, i32) {
    %c0_i32 = arith.constant 0 : i32
    %c0_i32_0 = arith.constant 0 : i32
    return %arg0, %c0_i32 : i32, i32
  }
  func.func @transform_1(%arg0: i32) -> (i32, i32) {
    %c0_i32 = arith.constant 0 : i32
    %c0_i32_0 = arith.constant 0 : i32
    %c0_i32_1 = arith.constant 0 : i32
    return %c0_i32, %c0_i32_0 : i32, i32
  }
  func.func @transform_2(%arg0: i32) -> (i32, i32) {
    %c0_i32 = arith.constant 0 : i32
    %c0_i32_0 = arith.constant 0 : i32
    %c0_i32_1 = arith.constant 0 : i32
    return %c0_i32, %c0_i32_0 : i32, i32
  }
  func.func @transform_3(%arg0: i32) -> (i32, i32) {
    %c0_i32 = arith.constant 0 : i32
    %c0_i32_0 = arith.constant 0 : i32
    %c0_i32_1 = arith.constant 0 : i32
    return %c0_i32, %c0_i32_0 : i32, i32
  }
  func.func @transform_4(%arg0: i32) -> (i32, i32) {
    %c0_i32 = arith.constant 0 : i32
    %c0_i32_0 = arith.constant 0 : i32
    %c0_i32_1 = arith.constant 0 : i32
    return %c0_i32, %c0_i32_0 : i32, i32
  }
  func.func @transform_5(%arg0: i32) -> (i32, i32) {
    %c0_i32 = arith.constant 0 : i32
    %c0_i32_0 = arith.constant 0 : i32
    %c0_i32_1 = arith.constant 0 : i32
    return %c0_i32, %c0_i32_0 : i32, i32
  }
  func.func @transform_6(%arg0: i32) -> (i32, i32) {
    %c0_i32 = arith.constant 0 : i32
    %c0_i32_0 = arith.constant 0 : i32
    %c0_i32_1 = arith.constant 0 : i32
    return %c0_i32, %c0_i32_0 : i32, i32
  }
  func.func @transform_7(%arg0: i32) -> (i32, i32) {
    %c0_i32 = arith.constant 0 : i32
    %c0_i32_0 = arith.constant 0 : i32
    return %arg0, %c0_i32 : i32, i32
  }
}

</mosaic_0001>

<llo_original>
// kernel: tpu_custom_call.1
$region0: #{tpu_custom_call.1}
  #allocation0 [shape = 'u32[]', space=smem, size = 0x4, offset = 0x4, fixed_abs, tag = 'smem constant byte address 0x4 - core index']
  #allocation1 [shape = 'u32[72,128]{1,0:T(1,128)}', space=vmem, size = 0x9000, scoped, tag = 'internal scratch']
  %s0 = inlined_call_operand.hbm [shape: f32[8,16], index: 0, kind: input, shape index: {}]
  %s1 = inlined_call_operand.hbm [shape: bf16[16,32], index: 1, kind: input, shape index: {}]
  %s2 = inlined_call_operand.vmem [shape: f32[1,32], index: 2, kind: input, shape index: {}]
  %s3 = inlined_call_operand.hbm [shape: bf16[32,32], index: 3, kind: input, shape index: {}]
  %s4 = inlined_call_operand.vmem [shape: f32[1,32], index: 4, kind: input, shape index: {}]
  %s5 = inlined_call_operand.hbm [shape: bf16[32,128], index: 5, kind: input, shape index: {}]
  %s6 = inlined_call_operand.vmem [shape: f32[1,128], index: 6, kind: input, shape index: {}]
  %s7 = inlined_call_operand.hbm [shape: f32[8,128], index: 7, kind: output, shape index: {}]
  %s8 = sld [smem:[#allocation0]]
  $region54: #{tpu_custom_call.1} parent=0
    _
  %s10 = ssub.s32 1, %s8
  %s11 = scalar_select 0, %s10, %s8
  $region1: #{tpu_custom_call.1} parent=0
    #allocation2 [shape = 'u8[4096]{0}', space=vmem, size = 0x1000, scoped, tag = 'input window, operand 0, single buffered']
    #allocation3 [shape = 's32[1]{0}', space=sflag, size = 0x4, scoped, tag = 'scoped memory for tpu_custom_call.1']
    #allocation4 [shape = 's32[1]{0}', space=sflag, size = 0x4, scoped, tag = 'scoped memory for tpu_custom_call.1']
    #allocation5 [shape = 'u8[4096]{0}', space=vmem, size = 0x1000, scoped, tag = 'input window, operand 1, single buffered']
    #allocation6 [shape = 's32[1]{0}', space=sflag, size = 0x4, scoped, tag = 'scoped memory for tpu_custom_call.1']
    #allocation7 [shape = 'u8[8192]{0}', space=vmem, size = 0x2000, scoped, tag = 'input window, operand 3, single buffered']
    #allocation8 [shape = 'u8[8192]{0}', space=vmem, size = 0x2000, scoped, tag = 'input window, operand 5, single buffered']
    #allocation9 [shape = 's32[1]{0}', space=sflag, size = 0x4, scoped, tag = 'scoped memory for tpu_custom_call.1']
    #allocation10 [shape = 'u8[4096]{0}', space=vmem, size = 0x1000, scoped, tag = 'output window, operand 0, single buffered']
    %12 = vsyncpa [#allocation3], 0
    %13 = vsyncpa [#allocation6], 0
    %14 = vsyncpa [#allocation9], 0
    %15 = vsyncpa [#allocation4], 0
    // Predicated region
    $region2: #{tpu_custom_call.1} parent=1 // pred_check
      _
    $region3: #{tpu_custom_call.1} parent=1 // pred_check_branch
      %17 = sbr.rel (0) target = $region5
    $region4: #{tpu_custom_call.1} parent=1 // pred_region
      %19 = vsyncadd [#allocation3], 0
      %s21 = sshll.u32 %s0, 4
      %s22 = int_to_ptr.hbm [resolvable:$true] %s21
      %s23 = sshll.u32 [#allocation2], 4
      %s24 = int_to_ptr.vmem [resolvable:$true] %s23
      %26 = dma.hbm_to_vmem [thread:$0]  %s22, 128, %s24, [#allocation3]
    $region5: #{tpu_custom_call.1} parent=1 // pred_fallthru
      _
    // Predicated region
    $region6: #{tpu_custom_call.1} parent=1 // pred_check
      _
    $region7: #{tpu_custom_call.1} parent=1 // pred_check_branch
      %28 = sbr.rel (0) target = $region9
    $region8: #{tpu_custom_call.1} parent=1 // pred_region
      %30 = vsyncadd [#allocation6], 0
      %s31 = sshll.u32 %s1, 4
      %s32 = int_to_ptr.hbm [resolvable:$true] %s31
      %s33 = sshll.u32 [#allocation5], 4
      %s34 = int_to_ptr.vmem [resolvable:$true] %s33
      %39 = dma.hbm_to_vmem [thread:$0]  %s32, 128, %s34, [#allocation6], 64, 64, 4
    $region9: #{tpu_custom_call.1} parent=1 // pred_fallthru
      _
    // Predicated region
    $region10: #{tpu_custom_call.1} parent=1 // pred_check
      _
    $region11: #{tpu_custom_call.1} parent=1 // pred_check_branch
      %41 = sbr.rel (0) target = $region13
    $region12: #{tpu_custom_call.1} parent=1 // pred_region
      _
    $region13: #{tpu_custom_call.1} parent=1 // pred_fallthru
      _
    // Predicated region
    $region14: #{tpu_custom_call.1} parent=1 // pred_check
      _
    $region15: #{tpu_custom_call.1} parent=1 // pred_check_branch
      %43 = sbr.rel (0) target = $region17
    $region16: #{tpu_custom_call.1} parent=1 // pred_region
      %45 = vsyncadd [#allocation6], 0
      %s46 = sshll.u32 %s3, 4
      %s47 = int_to_ptr.hbm [resolvable:$true] %s46
      %s48 = sshll.u32 [#allocation7], 4
      %s49 = int_to_ptr.vmem [resolvable:$true] %s48
      %54 = dma.hbm_to_vmem [thread:$0]  %s47, 256, %s49, [#allocation6], 64, 64, 4
    $region17: #{tpu_custom_call.1} parent=1 // pred_fallthru
      _
    // Predicated region
    $region18: #{tpu_custom_call.1} parent=1 // pred_check
      _
    $region19: #{tpu_custom_call.1} parent=1 // pred_check_branch
      %56 = sbr.rel (0) target = $region21
    $region20: #{tpu_custom_call.1} parent=1 // pred_region
      _
    $region21: #{tpu_custom_call.1} parent=1 // pred_fallthru
      _
    // Predicated region
    $region22: #{tpu_custom_call.1} parent=1 // pred_check
      _
    $region23: #{tpu_custom_call.1} parent=1 // pred_check_branch
      %58 = sbr.rel (0) target = $region25
    $region24: #{tpu_custom_call.1} parent=1 // pred_region
      %60 = vsyncadd [#allocation9], 0
      %s61 = sshll.u32 %s5, 4
      %s62 = int_to_ptr.hbm [resolvable:$true] %s61
      %s63 = sshll.u32 [#allocation8], 4
      %s64 = int_to_ptr.vmem [resolvable:$true] %s63
      %69 = dma.hbm_to_vmem [thread:$0]  %s62, 256, %s64, [#allocation9], 64, 64, 4
    $region25: #{tpu_custom_call.1} parent=1 // pred_fallthru
      _
    // Predicated region
    $region26: #{tpu_custom_call.1} parent=1 // pred_check
      _
    $region27: #{tpu_custom_call.1} parent=1 // pred_check_branch
      %71 = sbr.rel (0) target = $region29
    $region28: #{tpu_custom_call.1} parent=1 // pred_region
      _
    $region29: #{tpu_custom_call.1} parent=1 // pred_fallthru
      _
    // Predicated region
    $region30: #{tpu_custom_call.1} parent=1 // pred_check
      _
    $region31: #{tpu_custom_call.1} parent=1 // pred_check_branch
      %73 = sbr.rel (0) target = $region33
    $region32: #{tpu_custom_call.1} parent=1 // pred_region
      %75 = dma.done [#allocation3], 128
    $region33: #{tpu_custom_call.1} parent=1 // pred_fallthru
      _
    // Predicated region
    $region34: #{tpu_custom_call.1} parent=1 // pred_check
      _
    $region35: #{tpu_custom_call.1} parent=1 // pred_check_branch
      %77 = sbr.rel (0) target = $region37
    $region36: #{tpu_custom_call.1} parent=1 // pred_region
      %79 = dma.done [#allocation6], 128
    $region37: #{tpu_custom_call.1} parent=1 // pred_fallthru
      _
    // Predicated region
    $region38: #{tpu_custom_call.1} parent=1 // pred_check
      _
    $region39: #{tpu_custom_call.1} parent=1 // pred_check_branch
      %81 = sbr.rel (0) target = $region41
    $region40: #{tpu_custom_call.1} parent=1 // pred_region
      %83 = dma.done [#allocation6], 256
    $region41: #{tpu_custom_call.1} parent=1 // pred_fallthru
      _
    // Predicated region
    $region42: #{tpu_custom_call.1} parent=1 // pred_check
      _
    $region43: #{tpu_custom_call.1} parent=1 // pred_check_branch
      %85 = sbr.rel (0) target = $region45
    $region44: #{tpu_custom_call.1} parent=1 // pred_region
      %87 = dma.done [#allocation9], 256
    $region45: #{tpu_custom_call.1} parent=1 // pred_fallthru
      _
    %v89 = vld [vmem:[#allocation2] sm:$0xff]
    %v90 = vpack.c.bf16 %v89, %v89
    %v91 = vld [vmem:[#allocation5] sm:$0xf]
    %v92 = vld [vmem:[#allocation5 + $0x4] sm:$0xf]
    %v93 = vld [vmem:[%s2] sm:$0x1]
    %v95 = vperm.slane %v93, 0
    %v99 = vunpack.c.l.b16 %v91
    %v100 = vunpack.c.l.b16 %v92
    %v101 = vpack.c.b16 %v100, %v99
    %vm103 = vcmask 130048
    %v105 = vsel %vm103, %v90, 0
    %107 = vmatpush.bf16.msra.mxu0 0
    %108 = vmatpush.bf16.msra.mxu0 0
    %109 = vmatpush.bf16.msra.mxu0 0
    %110 = vmatpush.bf16.msra.mxu0 0
    %111 = vmatpush.bf16.msra.mxu0 0
    %112 = vmatpush.bf16.msra.mxu0 0
    %113 = vmatpush.bf16.msra.mxu0 0
    %114 = vmatpush.bf16.msra.mxu0 %v101
    %115 = vmatmul.bf16.gmra.mxu0 %v105
    %v116 = vpop.f32.mrf.mxu0
    %v117 = vadd.f32 %v95, %v116
    %v118 = vpop.f32.mrf.mxu0
    %119 = vdwg.mxu0
    %v120 = vmax.f32 %v117, 0.0
    %v121 = vpack.c.bf16 %v120, %v120
    %v122 = vld [vmem:[#allocation7] sm:$0xf]
    %v123 = vld [vmem:[#allocation7 + $0x4] sm:$0xf]
    %v124 = vld [vmem:[#allocation7 + $0x8] sm:$0xf]
    %v125 = vld [vmem:[#allocation7 + $0xc] sm:$0xf]
    %v126 = vld [vmem:[%s4] sm:$0x1]
    %v128 = vperm.slane %v126, 0
    %v134 = vunpack.c.l.b16 %v122
    %v135 = vunpack.c.l.b16 %v123
    %v136 = vunpack.c.l.b16 %v124
    %v137 = vunpack.c.l.b16 %v125
    %v138 = vpack.c.b16 %v135, %v134
    %v139 = vpack.c.b16 %v137, %v136
    %vm142 = vcmask 261120
    %v144 = vsel %vm142, %v121, 0
    %146 = vmatpush.bf16.msra.mxu0 0
    %147 = vmatpush.bf16.msra.mxu0 0
    %148 = vmatpush.bf16.msra.mxu0 0
    %149 = vmatpush.bf16.msra.mxu0 0
    %150 = vmatpush.bf16.msra.mxu0 0
    %151 = vmatpush.bf16.msra.mxu0 0
    %152 = vmatpush.bf16.msra.mxu0 %v139
    %153 = vmatpush.bf16.msra.mxu0 %v138
    %154 = vmatmul.bf16.gmra.mxu0 %v144
    %v155 = vpop.f32.mrf.mxu0
    %v156 = vadd.f32 %v128, %v155
    %v157 = vpop.f32.mrf.mxu0
    %158 = vdwg.mxu0
    %v159 = vmax.f32 %v156, 0.0
    %v160 = vpack.c.bf16 %v159, %v159
    %v161 = vld [vmem:[#allocation8] sm:$0xf]
    %v162 = vld [vmem:[#allocation8 + $0x4] sm:$0xf]
    %v163 = vld [vmem:[#allocation8 + $0x8] sm:$0xf]
    %v164 = vld [vmem:[#allocation8 + $0xc] sm:$0xf]
    %v165 = vld [vmem:[%s6] sm:$0x1]
    %v167 = vperm.slane %v165, 0
    %v173 = vunpack.c.l.b16 %v161
    %v174 = vunpack.c.l.b16 %v162
    %v175 = vunpack.c.l.b16 %v163
    %v176 = vunpack.c.l.b16 %v164
    %v177 = vpack.c.b16 %v174, %v173
    %v178 = vpack.c.b16 %v176, %v175
    %v182 = vsel %vm142, %v160, 0
    %184 = vmatpush.bf16.msra.mxu0 0
    %185 = vmatpush.bf16.msra.mxu0 0
    %186 = vmatpush.bf16.msra.mxu0 0
    %187 = vmatpush.bf16.msra.mxu0 0
    %188 = vmatpush.bf16.msra.mxu0 0
    %189 = vmatpush.bf16.msra.mxu0 0
    %190 = vmatpush.bf16.msra.mxu0 %v178
    %191 = vmatpush.bf16.msra.mxu0 %v177
    %192 = vmatmul.bf16.gmra.mxu0 %v182
    %v193 = vpop.f32.mrf.mxu0
    %v194 = vadd.f32 %v167, %v193
    %v195 = vpop.f32.mrf.mxu0
    %196 = vdwg.mxu0
    %v197 = vtanh.pop %v194
    %198 = vst [vmem:[#allocation10] sm:$0xff] %v197
    // Predicated region
    $region46: #{tpu_custom_call.1} parent=1 // pred_check
      _
    $region47: #{tpu_custom_call.1} parent=1 // pred_check_branch
      %200 = sbr.rel (0) target = $region49
    $region48: #{tpu_custom_call.1} parent=1 // pred_region
      %202 = vsyncadd [#allocation4], 0
      %s204 = sshll.u32 [#allocation10], 4
      %s205 = int_to_ptr.vmem [resolvable:$true] %s204
      %s206 = sshll.u32 %s7, 4
      %s207 = int_to_ptr.hbm [resolvable:$true] %s206
      %209 = dma.vmem_to_hbm [thread:$0]  %s205, 128, %s207, [#allocation4]
    $region49: #{tpu_custom_call.1} parent=1 // pred_fallthru
      _
    // Predicated region
    $region50: #{tpu_custom_call.1} parent=1 // pred_check
      _
    $region51: #{tpu_custom_call.1} parent=1 // pred_check_branch
      %211 = sbr.rel (0) target = $region53
    $region52: #{tpu_custom_call.1} parent=1 // pred_region
      %213 = dma.done [#allocation4], 128
    $region53: #{tpu_custom_call.1} parent=1 // pred_fallthru
      _
    %214 = vsyncpa [#allocation3], 1
    %215 = vsyncpa [#allocation6], 1
    %216 = vsyncpa [#allocation9], 1
    %217 = vsyncpa [#allocation4], 1

</llo_original>
